<compile_context>
chip_gen: v5e
topology: v5e:2x2
jax: 0.10.0
libtpu: 0.0.40
codegen_flags: <defaults>
</compile_context>

<pallas_src>
import jax
import jax.numpy as jnp
from jax.experimental import pallas as pl
from jax.experimental.pallas import tpu as pltpu


def _round_up(v, m):
    return ((v + m - 1) // m) * m


def _padded_vmem_bytes(shape, itemsize=4):
    """VMEM bytes of one buffer after (8, 128) minor-dim tiling."""
    if len(shape) == 1:
        return _round_up(shape[0], 128) * 8 * itemsize
    lead = 1
    for d in shape[:-2]:
        lead *= d
    return lead * _round_up(shape[-2], 8) * _round_up(shape[-1], 128) * itemsize


def _ca_kernel(x_ref, pool_ref, w1_ref, b1_ref, wh_ref, bh_ref, ww_ref, bw_ref,
               eh_ref, ew_ref, o_ref):
    """One grid step: `nb` images, each stored lane-dense as (C, H*W)."""
    nb = x_ref.shape[0]

    # hoist the (tiny) constant operands out of the unrolled per-image loop
    pool = pool_ref[...]      # (HW, S)   fused pool_h / pool_w matrix
    w1 = w1_ref[...]          # (mip, C)  conv1 with BatchNorm folded
    b1 = b1_ref[...]          # (mip, 1)
    wh = wh_ref[...]          # (oup, mip)
    bh = bh_ref[...]          # (oup, 1)
    ww = ww_ref[...]          # (oup, mip)
    bw = bw_ref[...]          # (oup, 1)
    eh = eh_ref[...]          # (S, HW)   g_h[c, h*W+w] = a_h[c, h]
    ew = ew_ref[...]          # (S, HW)   g_w[c, h*W+w] = a_w[c, w]

    for i in range(nb):       # static, small unrolled loop over folded images
        x = x_ref[i].astype(jnp.float32)                                    # (C, HW)

        # AdaptiveAvgPool2d((None,1)) ++ AdaptiveAvgPool2d((1,None)) as one matmul
        y = jnp.dot(x, pool, preferred_element_type=jnp.float32)            # (C, S)

        # conv1 (1x1, BN folded) + h_swish
        z = jnp.dot(w1, y, preferred_element_type=jnp.float32) + b1         # (mip, S)
        z = z * jnp.clip(z + 3.0, 0.0, 6.0) * (1.0 / 6.0)

        # conv_h / conv_w (1x1) + sigmoid; only the H / W halves of S are used below
        a_h = jax.nn.sigmoid(jnp.dot(wh, z, preferred_element_type=jnp.float32) + bh)
        a_w = jax.nn.sigmoid(jnp.dot(ww, z, preferred_element_type=jnp.float32) + bw)

        # broadcast the 1-D gates back to lane-dense (C, HW) via 0/1 matrices (MXU idle
        # anyway); eh/ew zero out the unused half of S, so no slicing / relayout needed.
        g_h = jnp.dot(a_h, eh, preferred_element_type=jnp.float32)          # (C, HW)
        g_w = jnp.dot(a_w, ew, preferred_element_type=jnp.float32)          # (C, HW)

        o_ref[i] = (x * g_h * g_w).astype(o_ref.dtype)


def ca_block_forward(x_nchw, params, eps=1e-5):
    """Coordinate attention forward. x_nchw: (N, C, H, W) float -> same shape/dtype."""
    N, C, H, W = x_nchw.shape
    HW, S = H * W, H + W
    dtype = x_nchw.dtype
    itemsize = jnp.dtype(dtype).itemsize
    f32 = jnp.float32

    # --- fold BatchNorm (eval mode, running stats) into conv1 ---
    scale = (params["bn_gamma"].astype(f32) /
             jnp.sqrt(params["bn_var"].astype(f32) + eps))
    w1f = params["conv1_w"].astype(f32) * scale[:, None]                     # (mip, C)
    b1f = ((params["conv1_b"].astype(f32) - params["bn_mean"].astype(f32)) * scale
           + params["bn_beta"].astype(f32)).reshape(-1, 1)                   # (mip, 1)
    mip = w1f.shape[0]

    wh = params["conv_h_w"].astype(f32)                                      # (oup, mip)
    ww = params["conv_w_w"].astype(f32)                                      # (oup, mip)
    bh = params["conv_h_b"].astype(f32).reshape(-1, 1)
    bw = params["conv_w_b"].astype(f32).reshape(-1, 1)
    oup = wh.shape[0]
    assert oup == C, "elementwise product in ca_block requires oup == inp"

    # --- constant index matrices so everything stays lane-dense in the kernel ---
    hw_idx = jnp.arange(HW)
    row = hw_idx // W
    col = hw_idx % W
    s_idx = jnp.arange(S)
    eh = (s_idx[:, None] == row[None, :]).astype(f32)                        # (S, HW)
    ew = (s_idx[:, None] == (col[None, :] + H)).astype(f32)                  # (S, HW)
    pool = eh.T / W + ew.T / H                                               # (HW, S)

    # --- per-generation VMEM sizing (padded tile layout) ---
    c_pad = _round_up(C, 8)
    hw_pad = _round_up(HW, 128)
    io_img = c_pad * hw_pad * itemsize         # one image of the streamed dtype
    f32_img = c_pad * hw_pad * 4               # one f32 in-kernel intermediate
    weights = [pool, w1f, b1f, wh, bh, ww, bw, eh, ew]
    weight_vmem = 2 * sum(_padded_vmem_bytes(a.shape) for a in weights)      # dbl-buffered

    try:
        vmem_cap = int(getattr(pltpu.get_tpu_info(), "vmem_capacity_bytes", 0)) or (64 << 20)
    except Exception:
        vmem_cap = 64 << 20
    budget = int(0.70 * vmem_cap)              # ~90 MiB on v5e/v6e, ~45 MiB on v7x

    # footprint: 2x double-buffered input + 2x double-buffered output + ~4 f32 temps
    avail = budget - weight_vmem - 4 * f32_img
    max_nb = max(1, avail // max(1, 4 * io_img))
    nb = int(min(max_nb, N))
    if N >= 2:                                 # keep >= 2 grid steps for v7x's 2 TCs
        nb = min(nb, max(1, (N + 1) // 2))
    divs = [d for d in range(1, nb + 1) if N % d == 0]
    if divs and 2 * max(divs) >= nb:           # prefer no batch padding if close enough
        nb = max(divs)
    grid_n = -(-N // nb)
    n_pad = grid_n * nb

    footprint = 4 * nb * io_img + 4 * f32_img
    vmem_limit = int(min(vmem_cap,
                         max(16 << 20, int(1.15 * (footprint + weight_vmem)) + (2 << 20))))
    # TODO(synk): shapes where a single-image block (+ intermediates) exceeds VMEM
    # (huge C*H*W, esp. on v7x's 64 MiB) need a two-pass spatially tiled pool/apply path.

    x_flat = x_nchw.reshape(N, C, HW)          # free: contiguous NCHW -> lane-dense HW
    if n_pad != N:
        x_flat = jnp.pad(x_flat, ((0, n_pad - N), (0, 0), (0, 0)))

    weight_bytes = 4 * sum(int(a.size) for a in weights)
    cost = pl.CostEstimate(
        flops=int(N * (2 * C * HW * S             # fused pooling matmul
                       + 2 * mip * C * S          # conv1
                       + 4 * oup * mip * S        # conv_h + conv_w
                       + 4 * oup * S * HW         # gate broadcast matmuls
                       + 2 * C * HW)),            # epilogue multiplies
        transcendentals=int(N * 2 * oup * S),
        bytes_accessed=int(2 * N * C * HW * itemsize + weight_bytes),
    )

    out = pl.pallas_call(
        _ca_kernel,
        out_shape=jax.ShapeDtypeStruct((n_pad, C, HW), dtype),
        grid_spec=pltpu.PrefetchScalarGridSpec(
            num_scalar_prefetch=0,
            grid=(grid_n,),
            in_specs=[
                pl.BlockSpec((nb, C, HW), lambda n: (n, 0, 0)),
                pl.BlockSpec((HW, S), lambda n: (0, 0)),
                pl.BlockSpec((mip, C), lambda n: (0, 0)),
                pl.BlockSpec((mip, 1), lambda n: (0, 0)),
                pl.BlockSpec((oup, mip), lambda n: (0, 0)),
                pl.BlockSpec((oup, 1), lambda n: (0, 0)),
                pl.BlockSpec((oup, mip), lambda n: (0, 0)),
                pl.BlockSpec((oup, 1), lambda n: (0, 0)),
                pl.BlockSpec((S, HW), lambda n: (0, 0)),
                pl.BlockSpec((S, HW), lambda n: (0, 0)),
            ],
            out_specs=pl.BlockSpec((nb, C, HW), lambda n: (n, 0, 0)),
        ),
        compiler_params=pltpu.CompilerParams(
            dimension_semantics=("parallel",),
            vmem_limit_bytes=vmem_limit,
        ),
        cost_estimate=cost,
    )(x_flat, pool, w1f, b1f, wh, bh, ww, bw, eh, ew)

    return out[:N].reshape(N, C, H, W)


def _reference(x, params, eps=1e-5):
    """Pure-JAX reference mirroring the PyTorch module (BatchNorm in eval mode)."""
    N, C, H, W = x.shape
    x_h = jnp.mean(x, axis=3, keepdims=True)                        # (N,C,H,1)
    x_w = jnp.mean(x, axis=2, keepdims=True).transpose(0, 1, 3, 2)  # (N,C,W,1)
    y = jnp.concatenate([x_h, x_w], axis=2)                         # (N,C,H+W,1)
    y = jnp.einsum("nchw,mc->nmhw", y, params["conv1_w"]) + params["conv1_b"][None, :, None, None]
    scale = params["bn_gamma"] / jnp.sqrt(params["bn_var"] + eps)
    y = (y - params["bn_mean"][None, :, None, None]) * scale[None, :, None, None] \
        + params["bn_beta"][None, :, None, None]
    y = y * jnp.clip(y + 3.0, 0.0, 6.0) / 6.0
    yh, yw = y[:, :, :H, :], y[:, :, H:, :]
    yw = yw.transpose(0, 1, 3, 2)
    a_h = jax.nn.sigmoid(jnp.einsum("nchw,oc->nohw", yh, params["conv_h_w"])
                         + params["conv_h_b"][None, :, None, None])
    a_w = jax.nn.sigmoid(jnp.einsum("nchw,oc->nohw", yw, params["conv_w_w"])
                         + params["conv_w_b"][None, :, None, None])
    return x * a_w * a_h


def make_params(key, inp, oup, reduction=16):
    mip = max(8, inp // reduction)
    ks = jax.random.split(key, 6)
    return {
        "conv1_w": jax.random.normal(ks[0], (mip, inp), jnp.float32) * 0.2,
        "conv1_b": jax.random.normal(ks[1], (mip,), jnp.float32) * 0.1,
        "bn_gamma": jnp.ones((mip,), jnp.float32),
        "bn_beta": jnp.zeros((mip,), jnp.float32),
        "bn_mean": jnp.zeros((mip,), jnp.float32),
        "bn_var": jnp.ones((mip,), jnp.float32),
        "conv_h_w": jax.random.normal(ks[2], (oup, mip), jnp.float32) * 0.2,
        "conv_h_b": jax.random.normal(ks[3], (oup,), jnp.float32) * 0.1,
        "conv_w_w": jax.random.normal(ks[4], (oup, mip), jnp.float32) * 0.2,
        "conv_w_b": jax.random.normal(ks[5], (oup,), jnp.float32) * 0.1,
    }


if __name__ == "__main__":
    key = jax.random.PRNGKey(0)
    kx, kp = jax.random.split(key)

    N, C, H, W = 2, 4, 16, 16        # inp = oup = 4, mip = max(8, 4//16) = 8
    x = jax.random.normal(kx, (N, C, H, W), jnp.float32)
    params = make_params(kp, inp=C, oup=C, reduction=16)

    # Tolerance note: MXU matmuls at default precision round operands to bf16, and the
    # reference path (jnp.mean / exact broadcasts) does not, so allow a few 1e-3 rel.
    ATOL = RTOL = 2e-2

    out = jax.block_until_ready(ca_block_forward(x, params))
    ref = jax.block_until_ready(_reference(x, params))
    assert out.shape == (N, C, H, W)
    assert jnp.allclose(out, ref, atol=ATOL, rtol=RTOL), "mismatch vs reference"

    # batch-folding path (nb = 2) and non-divisor batch (padding path)
    for n2 in (4, 3):
        x2 = jax.random.normal(jax.random.PRNGKey(n2), (n2, C, H, W), jnp.float32)
        out2 = jax.block_until_ready(ca_block_forward(x2, params))
        ref2 = jax.block_until_ready(_reference(x2, params))
        assert jnp.allclose(out2, ref2, atol=ATOL, rtol=RTOL), f"mismatch (N={n2})"

    # bf16 I/O path: HBM stream in bf16, f32 math inside, bf16 store
    xb = x.astype(jnp.bfloat16)
    outb = jax.block_until_ready(ca_block_forward(xb, params))
    refb = _reference(xb.astype(jnp.float32), params)
    assert outb.dtype == jnp.bfloat16
    assert jnp.allclose(outb.astype(jnp.float32), refb, atol=5e-2, rtol=5e-2), "mismatch (bf16)"

    print("KERNEL_OK")
</pallas_src>

<mosaic_0001>
module attributes {stable_mosaic.version = 11 : i64} {
  func.func @_ca_kernel(%arg0: i32, %arg1: memref<1x4x256xf32, #tpu.memory_space<vmem>>, %arg2: memref<256x32xf32, #tpu.memory_space<vmem>>, %arg3: memref<8x4xf32, #tpu.memory_space<vmem>>, %arg4: memref<8x1xf32, #tpu.memory_space<vmem>>, %arg5: memref<4x8xf32, #tpu.memory_space<vmem>>, %arg6: memref<4x1xf32, #tpu.memory_space<vmem>>, %arg7: memref<4x8xf32, #tpu.memory_space<vmem>>, %arg8: memref<4x1xf32, #tpu.memory_space<vmem>>, %arg9: memref<32x256xf32, #tpu.memory_space<vmem>>, %arg10: memref<32x256xf32, #tpu.memory_space<vmem>>, %arg11: memref<1x4x256xf32, #tpu.memory_space<vmem>>) attributes {dimension_semantics = [#tpu.dimension_semantics<parallel>], iteration_bounds = array<i64: 2>, scalar_prefetch = 0 : i64, scratch_operands = 0 : i64, tpu.core_type = #tpu.core_type<tc>, window_params = [{transform_indices = @transform_0, window_bounds = array<i64: 1, 4, 256>}, {pipeline_mode = #tpu.pipeline_mode<synchronous>, transform_indices = @transform_1, window_bounds = array<i64: 256, 32>}, {pipeline_mode = #tpu.pipeline_mode<synchronous>, transform_indices = @transform_2, window_bounds = array<i64: 8, 4>}, {pipeline_mode = #tpu.pipeline_mode<synchronous>, transform_indices = @transform_3, window_bounds = array<i64: 8, 1>}, {pipeline_mode = #tpu.pipeline_mode<synchronous>, transform_indices = @transform_4, window_bounds = array<i64: 4, 8>}, {pipeline_mode = #tpu.pipeline_mode<synchronous>, transform_indices = @transform_5, window_bounds = array<i64: 4, 1>}, {pipeline_mode = #tpu.pipeline_mode<synchronous>, transform_indices = @transform_6, window_bounds = array<i64: 4, 8>}, {pipeline_mode = #tpu.pipeline_mode<synchronous>, transform_indices = @transform_7, window_bounds = array<i64: 4, 1>}, {pipeline_mode = #tpu.pipeline_mode<synchronous>, transform_indices = @transform_8, window_bounds = array<i64: 32, 256>}, {pipeline_mode = #tpu.pipeline_mode<synchronous>, transform_indices = @transform_9, window_bounds = array<i64: 32, 256>}, {transform_indices = @transform_10, window_bounds = array<i64: 1, 4, 256>}]} {
    %c0 = arith.constant 0 : index
    %c0_0 = arith.constant 0 : index
    %0 = vector.load %arg2[%c0, %c0_0] : memref<256x32xf32, #tpu.memory_space<vmem>>, vector<256x32xf32>
    %c0_1 = arith.constant 0 : index
    %c0_2 = arith.constant 0 : index
    %1 = vector.load %arg3[%c0_1, %c0_2] : memref<8x4xf32, #tpu.memory_space<vmem>>, vector<8x4xf32>
    %c0_3 = arith.constant 0 : index
    %c0_4 = arith.constant 0 : index
    %2 = vector.load %arg4[%c0_3, %c0_4] : memref<8x1xf32, #tpu.memory_space<vmem>>, vector<8x1xf32>
    %c0_5 = arith.constant 0 : index
    %c0_6 = arith.constant 0 : index
    %3 = vector.load %arg5[%c0_5, %c0_6] : memref<4x8xf32, #tpu.memory_space<vmem>>, vector<4x8xf32>
    %c0_7 = arith.constant 0 : index
    %c0_8 = arith.constant 0 : index
    %4 = vector.load %arg6[%c0_7, %c0_8] : memref<4x1xf32, #tpu.memory_space<vmem>>, vector<4x1xf32>
    %c0_9 = arith.constant 0 : index
    %c0_10 = arith.constant 0 : index
    %5 = vector.load %arg7[%c0_9, %c0_10] : memref<4x8xf32, #tpu.memory_space<vmem>>, vector<4x8xf32>
    %c0_11 = arith.constant 0 : index
    %c0_12 = arith.constant 0 : index
    %6 = vector.load %arg8[%c0_11, %c0_12] : memref<4x1xf32, #tpu.memory_space<vmem>>, vector<4x1xf32>
    %c0_13 = arith.constant 0 : index
    %c0_14 = arith.constant 0 : index
    %7 = vector.load %arg9[%c0_13, %c0_14] : memref<32x256xf32, #tpu.memory_space<vmem>>, vector<32x256xf32>
    %c0_15 = arith.constant 0 : index
    %c0_16 = arith.constant 0 : index
    %8 = vector.load %arg10[%c0_15, %c0_16] : memref<32x256xf32, #tpu.memory_space<vmem>>, vector<32x256xf32>
    %c0_17 = arith.constant 0 : index
    %c0_18 = arith.constant 0 : index
    %c0_19 = arith.constant 0 : index
    %9 = vector.load %arg1[%c0_17, %c0_18, %c0_19] : memref<1x4x256xf32, #tpu.memory_space<vmem>>, vector<1x4x256xf32>
    %10 = vector.shape_cast %9 : vector<1x4x256xf32> to vector<4x256xf32>
    %cst = arith.constant dense<0.000000e+00> : vector<4x32xf32>
    %11 = tpu.matmul %10, %0, %cst {dimension_numbers = #tpu.dot_dimension_numbers<[1], [0], [0], [1], [0, 0, 1, 1], [], []>} : vector<4x256xf32>, vector<256x32xf32>, vector<4x32xf32> -> vector<4x32xf32>
    %cst_20 = arith.constant dense<0.000000e+00> : vector<8x32xf32>
    %12 = tpu.matmul %1, %11, %cst_20 {dimension_numbers = #tpu.dot_dimension_numbers<[1], [0], [0], [1], [0, 0, 1, 1], [], []>} : vector<8x4xf32>, vector<4x32xf32>, vector<8x32xf32> -> vector<8x32xf32>
    %13 = vector.broadcast %2 : vector<8x1xf32> to vector<8x32xf32>
    %14 = arith.addf %12, %13 : vector<8x32xf32>
    %cst_21 = arith.constant 3.000000e+00 : f32
    %15 = vector.broadcast %cst_21 : f32 to vector<8x32xf32>
    %16 = arith.addf %14, %15 : vector<8x32xf32>
    %cst_22 = arith.constant 0.000000e+00 : f32
    %cst_23 = arith.constant 6.000000e+00 : f32
    %17 = vector.broadcast %cst_22 : f32 to vector<8x32xf32>
    %18 = arith.maximumf %17, %16 : vector<8x32xf32>
    %19 = vector.broadcast %cst_23 : f32 to vector<8x32xf32>
    %20 = arith.minimumf %19, %18 : vector<8x32xf32>
    %21 = arith.mulf %14, %20 : vector<8x32xf32>
    %cst_24 = arith.constant 0.166666672 : f32
    %22 = vector.broadcast %cst_24 : f32 to vector<8x32xf32>
    %23 = arith.mulf %21, %22 : vector<8x32xf32>
    %cst_25 = arith.constant dense<0.000000e+00> : vector<4x32xf32>
    %24 = tpu.matmul %3, %23, %cst_25 {dimension_numbers = #tpu.dot_dimension_numbers<[1], [0], [0], [1], [0, 0, 1, 1], [], []>} : vector<4x8xf32>, vector<8x32xf32>, vector<4x32xf32> -> vector<4x32xf32>
    %25 = vector.broadcast %4 : vector<4x1xf32> to vector<4x32xf32>
    %26 = arith.addf %24, %25 : vector<4x32xf32>
    %27 = arith.negf %26 : vector<4x32xf32>
    %28 = math.exp %27 : vector<4x32xf32>
    %cst_26 = arith.constant 1.000000e+00 : f32
    %29 = vector.broadcast %cst_26 : f32 to vector<4x32xf32>
    %30 = arith.addf %29, %28 : vector<4x32xf32>
    %31 = arith.divf %29, %30 : vector<4x32xf32>
    %cst_27 = arith.constant dense<0.000000e+00> : vector<4x32xf32>
    %32 = tpu.matmul %5, %23, %cst_27 {dimension_numbers = #tpu.dot_dimension_numbers<[1], [0], [0], [1], [0, 0, 1, 1], [], []>} : vector<4x8xf32>, vector<8x32xf32>, vector<4x32xf32> -> vector<4x32xf32>
    %33 = vector.broadcast %6 : vector<4x1xf32> to vector<4x32xf32>
    %34 = arith.addf %32, %33 : vector<4x32xf32>
    %35 = arith.negf %34 : vector<4x32xf32>
    %36 = math.exp %35 : vector<4x32xf32>
    %cst_28 = arith.constant 1.000000e+00 : f32
    %37 = vector.broadcast %cst_28 : f32 to vector<4x32xf32>
    %38 = arith.addf %37, %36 : vector<4x32xf32>
    %39 = arith.divf %37, %38 : vector<4x32xf32>
    %cst_29 = arith.constant dense<0.000000e+00> : vector<4x256xf32>
    %40 = tpu.matmul %31, %7, %cst_29 {dimension_numbers = #tpu.dot_dimension_numbers<[1], [0], [0], [1], [0, 0, 1, 1], [], []>} : vector<4x32xf32>, vector<32x256xf32>, vector<4x256xf32> -> vector<4x256xf32>
    %cst_30 = arith.constant dense<0.000000e+00> : vector<4x256xf32>
    %41 = tpu.matmul %39, %8, %cst_30 {dimension_numbers = #tpu.dot_dimension_numbers<[1], [0], [0], [1], [0, 0, 1, 1], [], []>} : vector<4x32xf32>, vector<32x256xf32>, vector<4x256xf32> -> vector<4x256xf32>
    %42 = arith.mulf %10, %40 : vector<4x256xf32>
    %43 = arith.mulf %42, %41 : vector<4x256xf32>
    %c0_31 = arith.constant 0 : index
    %c0_32 = arith.constant 0 : index
    %c0_33 = arith.constant 0 : index
    %44 = vector.load %arg11[%c0_31, %c0_32, %c0_33] : memref<1x4x256xf32, #tpu.memory_space<vmem>>, vector<1x4x256xf32>
    %45 = vector.shape_cast %44 : vector<1x4x256xf32> to vector<4x256xf32>
    %46 = vector.shape_cast %43 : vector<4x256xf32> to vector<1x4x256xf32>
    tpu.vector_store %arg11[%c0_31, %c0_32, %c0_33], %46 {strides = array<i32>} : memref<1x4x256xf32, #tpu.memory_space<vmem>>, vector<1x4x256xf32>,
    return
  }
  func.func @transform_0(%arg0: i32) -> (i32, i32, i32) {
    %c0_i32 = arith.constant 0 : i32
    %c0_i32_0 = arith.constant 0 : i32
    %c0_i32_1 = arith.constant 0 : i32
    return %arg0, %c0_i32, %c0_i32_0 : i32, i32, i32
  }
  func.func @transform_1(%arg0: i32) -> (i32, i32) {
    %c0_i32 = arith.constant 0 : i32
    %c0_i32_0 = arith.constant 0 : i32
    %c0_i32_1 = arith.constant 0 : i32
    return %c0_i32, %c0_i32_0 : i32, i32
  }
  func.func @transform_2(%arg0: i32) -> (i32, i32) {
    %c0_i32 = arith.constant 0 : i32
    %c0_i32_0 = arith.constant 0 : i32
    %c0_i32_1 = arith.constant 0 : i32
    return %c0_i32, %c0_i32_0 : i32, i32
  }
  func.func @transform_3(%arg0: i32) -> (i32, i32) {
    %c0_i32 = arith.constant 0 : i32
    %c0_i32_0 = arith.constant 0 : i32
    %c0_i32_1 = arith.constant 0 : i32
    return %c0_i32, %c0_i32_0 : i32, i32
  }
  func.func @transform_4(%arg0: i32) -> (i32, i32) {
    %c0_i32 = arith.constant 0 : i32
    %c0_i32_0 = arith.constant 0 : i32
    %c0_i32_1 = arith.constant 0 : i32
    return %c0_i32, %c0_i32_0 : i32, i32
  }
  func.func @transform_5(%arg0: i32) -> (i32, i32) {
    %c0_i32 = arith.constant 0 : i32
    %c0_i32_0 = arith.constant 0 : i32
    %c0_i32_1 = arith.constant 0 : i32
    return %c0_i32, %c0_i32_0 : i32, i32
  }
  func.func @transform_6(%arg0: i32) -> (i32, i32) {
    %c0_i32 = arith.constant 0 : i32
    %c0_i32_0 = arith.constant 0 : i32
    %c0_i32_1 = arith.constant 0 : i32
    return %c0_i32, %c0_i32_0 : i32, i32
  }
  func.func @transform_7(%arg0: i32) -> (i32, i32) {
    %c0_i32 = arith.constant 0 : i32
    %c0_i32_0 = arith.constant 0 : i32
    %c0_i32_1 = arith.constant 0 : i32
    return %c0_i32, %c0_i32_0 : i32, i32
  }
  func.func @transform_8(%arg0: i32) -> (i32, i32) {
    %c0_i32 = arith.constant 0 : i32
    %c0_i32_0 = arith.constant 0 : i32
    %c0_i32_1 = arith.constant 0 : i32
    return %c0_i32, %c0_i32_0 : i32, i32
  }
  func.func @transform_9(%arg0: i32) -> (i32, i32) {
    %c0_i32 = arith.constant 0 : i32
    %c0_i32_0 = arith.constant 0 : i32
    %c0_i32_1 = arith.constant 0 : i32
    return %c0_i32, %c0_i32_0 : i32, i32
  }
  func.func @transform_10(%arg0: i32) -> (i32, i32, i32) {
    %c0_i32 = arith.constant 0 : i32
    %c0_i32_0 = arith.constant 0 : i32
    %c0_i32_1 = arith.constant 0 : i32
    return %arg0, %c0_i32, %c0_i32_0 : i32, i32, i32
  }
}

</mosaic_0001>

<llo_original>
// kernel: tpu_custom_call.1
$region0: #{tpu_custom_call.1}
  #allocation0 [shape = 'u32[]', space=smem, size = 0x4, offset = 0x4, fixed_abs, tag = 'smem constant byte address 0x4 - core index']
  #allocation1 [shape = 'u32[72,128]{1,0:T(1,128)}', space=vmem, size = 0x9000, scoped, tag = 'internal scratch']
  %s0 = inlined_call_operand.vmem [shape: f32[2,4,256], index: 0, kind: input, shape index: {}]
  %s1 = inlined_call_operand.vmem [shape: f32[256,32], index: 1, kind: input, shape index: {}]
  %s2 = inlined_call_operand.vmem [shape: f32[8,4], index: 2, kind: input, shape index: {}]
  %s3 = inlined_call_operand.vmem [shape: f32[8,1], index: 3, kind: input, shape index: {}]
  %s4 = inlined_call_operand.vmem [shape: f32[4,8], index: 4, kind: input, shape index: {}]
  %s5 = inlined_call_operand.vmem [shape: f32[4,1], index: 5, kind: input, shape index: {}]
  %s6 = inlined_call_operand.vmem [shape: f32[4,8], index: 6, kind: input, shape index: {}]
  %s7 = inlined_call_operand.vmem [shape: f32[4,1], index: 7, kind: input, shape index: {}]
  %s8 = inlined_call_operand.vmem [shape: f32[32,256], index: 8, kind: input, shape index: {}]
  %s9 = inlined_call_operand.vmem [shape: f32[32,256], index: 9, kind: input, shape index: {}]
  %s10 = inlined_call_operand.hbm [shape: f32[2,4,256], index: 10, kind: output, shape index: {}]
  %s11 = sld [smem:[#allocation0]]
  $region73: #{tpu_custom_call.1} parent=0
    _
  %s13 = ssub.s32 1, %s11
  %s14 = scalar_select 0, %s13, %s11
  $region1: #{tpu_custom_call.1} parent=0
    #allocation2 [shape = 'u8[8192]{0}', space=vmem, size = 0x2000, scoped, tag = 'output window, operand 0']
    #allocation3 [shape = 's32[2]{0}', space=sflag, size = 0x8, scoped, tag = 'scoped memory for tpu_custom_call.1']
    %15 = vsyncpa [#allocation3], 0
    %s16 = scalar_lea.sflag [#allocation3], 1
    %17 = vsyncpa %s16, 0
    loop: start=0, step=1, limit=4
    $region2: #{tpu_custom_call.1} parent=1 // loop_pre_header
      _
    $region3: #{tpu_custom_call.1} parent=1 // loop_header
      %s19 = sphi 0, %s23
      %p20 = scmp.ge.s32.totalorder %s19, 4
      %s29 = sphi 0, %s31
      %s32 = sphi 0, %s29
      %s33 = sphi 0, %s32
      %s49 = sphi 0, %s33
      %s53 = sphi 0, %s53
      %s55 = sphi 0, %s53
      %s56 = sphi 0, %s55
      %s70 = sphi 0, %s56
      %s74 = sphi 0, %s74
      %s76 = sphi 0, %s74
      %s77 = sphi 0, %s76
      %s91 = sphi 0, %s77
      %s95 = sphi 0, %s95
      %s97 = sphi 0, %s95
      %s98 = sphi 0, %s97
      %s112 = sphi 0, %s98
      %s116 = sphi 0, %s116
      %s118 = sphi 0, %s116
      %s119 = sphi 0, %s118
      %s133 = sphi 0, %s119
      %s137 = sphi 0, %s137
      %s139 = sphi 0, %s137
      %s140 = sphi 0, %s139
      %s154 = sphi 0, %s140
      %s158 = sphi 0, %s158
      %s160 = sphi 0, %s158
      %s161 = sphi 0, %s160
      %s175 = sphi 0, %s161
      %s179 = sphi 0, %s179
      %s181 = sphi 0, %s179
      %s182 = sphi 0, %s181
      %s196 = sphi 0, %s182
      %s200 = sphi 0, %s200
      %s202 = sphi 0, %s200
      %s203 = sphi 0, %s202
      %s217 = sphi 0, %s203
      %s221 = sphi 0, %s221
      %s223 = sphi 0, %s221
      %s224 = sphi 0, %s223
      %s238 = sphi 0, %s224
      %s244 = sphi 0, %s246
      %s247 = sphi 0, %s244
      %s248 = sphi 0, %s247
      %s264 = sphi 0, %s248
    $region4: #{tpu_custom_call.1} parent=1 // loop_header_branch
      %22 = sbr.rel (%p20) target = $region8
    $region5: #{tpu_custom_call.1} parent=1 // loop_body
      %s24 = ssub.s32 %s19, 1
      %s25 = ssub.s32 %s19, 2
      %s26 = sadd.s32 %s19, 1
      %s27 = ssub.s32 %s19, %s26
      %p28 = scmp.eq.s32.totalorder %s27, 0
      %s30 = sadd.s32 %s29, 1
      %s31 = scalar_select %p28, %s29, %s30
      %p34 = pneg %p28
      %p35 = scmp.eq.s32.totalorder %s19, 1
      %p36 = por %p34, %p35
      %p37 = scmp.ne.s32.totalorder %s29, %s32
      %p38 = scmp.eq.s32.totalorder %s19, 0
      %p39 = por %p37, %p38
      %p40 = scmp.ne.s32.totalorder %s29, %s32
      %p41 = scmp.eq.s32.totalorder %s24, 1
      %p42 = por %p40, %p41
      %p43 = scmp.ne.s32.totalorder %s32, %s33
      %p44 = scmp.eq.s32.totalorder %s24, 0
      %p45 = por %p43, %p44
      %p46 = scmp.ne.s32.totalorder %s32, %s33
      %p47 = scmp.eq.s32.totalorder %s25, 1
      %p48 = por %p46, %p47
      %p50 = scmp.ne.s32.totalorder %s33, %s49
      %p51 = scmp.eq.s32.totalorder %s25, 0
      %p52 = por %p50, %p51
      %s54 = sadd.s32 %s53, 1
      %p57 = scmp.eq.s32.totalorder %s19, 1
      %p58 = scmp.ne.s32.totalorder %s53, %s55
      %p59 = scmp.eq.s32.totalorder %s19, 0
      %p60 = por %p58, %p59
      %p61 = scmp.ne.s32.totalorder %s53, %s55
      %p62 = scmp.eq.s32.totalorder %s24, 1
      %p63 = por %p61, %p62
      %p64 = scmp.ne.s32.totalorder %s55, %s56
      %p65 = scmp.eq.s32.totalorder %s24, 0
      %p66 = por %p64, %p65
      %p67 = scmp.ne.s32.totalorder %s55, %s56
      %p68 = scmp.eq.s32.totalorder %s25, 1
      %p69 = por %p67, %p68
      %p71 = scmp.ne.s32.totalorder %s56, %s70
      %p72 = scmp.eq.s32.totalorder %s25, 0
      %p73 = por %p71, %p72
      %s75 = sadd.s32 %s74, 1
      %p78 = scmp.eq.s32.totalorder %s19, 1
      %p79 = scmp.ne.s32.totalorder %s74, %s76
      %p80 = scmp.eq.s32.totalorder %s19, 0
      %p81 = por %p79, %p80
      %p82 = scmp.ne.s32.totalorder %s74, %s76
      %p83 = scmp.eq.s32.totalorder %s24, 1
      %p84 = por %p82, %p83
      %p85 = scmp.ne.s32.totalorder %s76, %s77
      %p86 = scmp.eq.s32.totalorder %s24, 0
      %p87 = por %p85, %p86
      %p88 = scmp.ne.s32.totalorder %s76, %s77
      %p89 = scmp.eq.s32.totalorder %s25, 1
      %p90 = por %p88, %p89
      %p92 = scmp.ne.s32.totalorder %s77, %s91
      %p93 = scmp.eq.s32.totalorder %s25, 0
      %p94 = por %p92, %p93
      %s96 = sadd.s32 %s95, 1
      %p99 = scmp.eq.s32.totalorder %s19, 1
      %p100 = scmp.ne.s32.totalorder %s95, %s97
      %p101 = scmp.eq.s32.totalorder %s19, 0
      %p102 = por %p100, %p101
      %p103 = scmp.ne.s32.totalorder %s95, %s97
      %p104 = scmp.eq.s32.totalorder %s24, 1
      %p105 = por %p103, %p104
      %p106 = scmp.ne.s32.totalorder %s97, %s98
      %p107 = scmp.eq.s32.totalorder %s24, 0
      %p108 = por %p106, %p107
      %p109 = scmp.ne.s32.totalorder %s97, %s98
      %p110 = scmp.eq.s32.totalorder %s25, 1
      %p111 = por %p109, %p110
      %p113 = scmp.ne.s32.totalorder %s98, %s112
      %p114 = scmp.eq.s32.totalorder %s25, 0
      %p115 = por %p113, %p114
      %s117 = sadd.s32 %s116, 1
      %p120 = scmp.eq.s32.totalorder %s19, 1
      %p121 = scmp.ne.s32.totalorder %s116, %s118
      %p122 = scmp.eq.s32.totalorder %s19, 0
      %p123 = por %p121, %p122
      %p124 = scmp.ne.s32.totalorder %s116, %s118
      %p125 = scmp.eq.s32.totalorder %s24, 1
      %p126 = por %p124, %p125
      %p127 = scmp.ne.s32.totalorder %s118, %s119
      %p128 = scmp.eq.s32.totalorder %s24, 0
      %p129 = por %p127, %p128
      %p130 = scmp.ne.s32.totalorder %s118, %s119
      %p131 = scmp.eq.s32.totalorder %s25, 1
      %p132 = por %p130, %p131
      %p134 = scmp.ne.s32.totalorder %s119, %s133
      %p135 = scmp.eq.s32.totalorder %s25, 0
      %p136 = por %p134, %p135
      %s138 = sadd.s32 %s137, 1
      %p141 = scmp.eq.s32.totalorder %s19, 1
      %p142 = scmp.ne.s32.totalorder %s137, %s139
      %p143 = scmp.eq.s32.totalorder %s19, 0
      %p144 = por %p142, %p143
      %p145 = scmp.ne.s32.totalorder %s137, %s139
      %p146 = scmp.eq.s32.totalorder %s24, 1
      %p147 = por %p145, %p146
      %p148 = scmp.ne.s32.totalorder %s139, %s140
      %p149 = scmp.eq.s32.totalorder %s24, 0
      %p150 = por %p148, %p149
      %p151 = scmp.ne.s32.totalorder %s139, %s140
      %p152 = scmp.eq.s32.totalorder %s25, 1
      %p153 = por %p151, %p152
      %p155 = scmp.ne.s32.totalorder %s140, %s154
      %p156 = scmp.eq.s32.totalorder %s25, 0
      %p157 = por %p155, %p156
      %s159 = sadd.s32 %s158, 1
      %p162 = scmp.eq.s32.totalorder %s19, 1
      %p163 = scmp.ne.s32.totalorder %s158, %s160
      %p164 = scmp.eq.s32.totalorder %s19, 0
      %p165 = por %p163, %p164
      %p166 = scmp.ne.s32.totalorder %s158, %s160
      %p167 = scmp.eq.s32.totalorder %s24, 1
      %p168 = por %p166, %p167
      %p169 = scmp.ne.s32.totalorder %s160, %s161
      %p170 = scmp.eq.s32.totalorder %s24, 0
      %p171 = por %p169, %p170
      %p172 = scmp.ne.s32.totalorder %s160, %s161
      %p173 = scmp.eq.s32.totalorder %s25, 1
      %p174 = por %p172, %p173
      %p176 = scmp.ne.s32.totalorder %s161, %s175
      %p177 = scmp.eq.s32.totalorder %s25, 0
      %p178 = por %p176, %p177
      %s180 = sadd.s32 %s179, 1
      %p183 = scmp.eq.s32.totalorder %s19, 1
      %p184 = scmp.ne.s32.totalorder %s179, %s181
      %p185 = scmp.eq.s32.totalorder %s19, 0
      %p186 = por %p184, %p185
      %p187 = scmp.ne.s32.totalorder %s179, %s181
      %p188 = scmp.eq.s32.totalorder %s24, 1
      %p189 = por %p187, %p188
      %p190 = scmp.ne.s32.totalorder %s181, %s182
      %p191 = scmp.eq.s32.totalorder %s24, 0
      %p192 = por %p190, %p191
      %p193 = scmp.ne.s32.totalorder %s181, %s182
      %p194 = scmp.eq.s32.totalorder %s25, 1
      %p195 = por %p193, %p194
      %p197 = scmp.ne.s32.totalorder %s182, %s196
      %p198 = scmp.eq.s32.totalorder %s25, 0
      %p199 = por %p197, %p198
      %s201 = sadd.s32 %s200, 1
      %p204 = scmp.eq.s32.totalorder %s19, 1
      %p205 = scmp.ne.s32.totalorder %s200, %s202
      %p206 = scmp.eq.s32.totalorder %s19, 0
      %p207 = por %p205, %p206
      %p208 = scmp.ne.s32.totalorder %s200, %s202
      %p209 = scmp.eq.s32.totalorder %s24, 1
      %p210 = por %p208, %p209
      %p211 = scmp.ne.s32.totalorder %s202, %s203
      %p212 = scmp.eq.s32.totalorder %s24, 0
      %p213 = por %p211, %p212
      %p214 = scmp.ne.s32.totalorder %s202, %s203
      %p215 = scmp.eq.s32.totalorder %s25, 1
      %p216 = por %p214, %p215
      %p218 = scmp.ne.s32.totalorder %s203, %s217
      %p219 = scmp.eq.s32.totalorder %s25, 0
      %p220 = por %p218, %p219
      %s222 = sadd.s32 %s221, 1
      %p225 = scmp.eq.s32.totalorder %s19, 1
      %p226 = scmp.ne.s32.totalorder %s221, %s223
      %p227 = scmp.eq.s32.totalorder %s19, 0
      %p228 = por %p226, %p227
      %p229 = scmp.ne.s32.totalorder %s221, %s223
      %p230 = scmp.eq.s32.totalorder %s24, 1
      %p231 = por %p229, %p230
      %p232 = scmp.ne.s32.totalorder %s223, %s224
      %p233 = scmp.eq.s32.totalorder %s24, 0
      %p234 = por %p232, %p233
      %p235 = scmp.ne.s32.totalorder %s223, %s224
      %p236 = scmp.eq.s32.totalorder %s25, 1
      %p237 = por %p235, %p236
      %p239 = scmp.ne.s32.totalorder %s224, %s238
      %p240 = scmp.eq.s32.totalorder %s25, 0
      %p241 = por %p239, %p240
      %s242 = ssub.s32 %s19, %s26
      %p243 = scmp.eq.s32.totalorder %s242, 0
      %s245 = sadd.s32 %s244, 1
      %s246 = scalar_select %p243, %s244, %s245
      %p249 = pneg %p243
      %p250 = scmp.eq.s32.totalorder %s19, 1
      %p251 = por %p249, %p250
      %p252 = scmp.ne.s32.totalorder %s244, %s247
      %p253 = scmp.eq.s32.totalorder %s19, 0
      %p254 = por %p252, %p253
      %p255 = scmp.ne.s32.totalorder %s244, %s247
      %p256 = scmp.eq.s32.totalorder %s24, 1
      %p257 = por %p255, %p256
      %p258 = scmp.ne.s32.totalorder %s247, %s248
      %p259 = scmp.eq.s32.totalorder %s24, 0
      %p260 = por %p258, %p259
      %p261 = scmp.ne.s32.totalorder %s247, %s248
      %p262 = scmp.eq.s32.totalorder %s25, 1
      %p263 = por %p261, %p262
      %p265 = scmp.ne.s32.totalorder %s248, %s264
      %p266 = scmp.eq.s32.totalorder %s25, 0
      %p267 = por %p265, %p266
      %p268 = scmp.le.s32.totalorder 1, %s19
      %p269 = scmp.lt.s32.totalorder %s19, 3
      %p270 = pnand %p268, %p269
      %p271 = pneg %p270
      // Predicated region
      $region9: #{tpu_custom_call.1} parent=5 // pred_check
        _
      $region10: #{tpu_custom_call.1} parent=5 // pred_check_branch
        %273 = sbr.rel (%p270) target = $region12
      $region11: #{tpu_custom_call.1} parent=5 // pred_region
        %s274 = ssub.s32 %s19, 1
        // Predicated region
        $region13: #{tpu_custom_call.1} parent=11 // pred_check
          %p275 = pneg %p66
        $region14: #{tpu_custom_call.1} parent=11 // pred_check_branch
          %277 = sbr.rel (%p275) target = $region16
        $region15: #{tpu_custom_call.1} parent=11 // pred_region
          _
        $region16: #{tpu_custom_call.1} parent=11 // pred_fallthru
          _
        // Predicated region
        $region17: #{tpu_custom_call.1} parent=11 // pred_check
          %p278 = pneg %p87
        $region18: #{tpu_custom_call.1} parent=11 // pred_check_branch
          %280 = sbr.rel (%p278) target = $region20
        $region19: #{tpu_custom_call.1} parent=11 // pred_region
          _
        $region20: #{tpu_custom_call.1} parent=11 // pred_fallthru
          _
        // Predicated region
        $region21: #{tpu_custom_call.1} parent=11 // pred_check
          %p281 = pneg %p108
        $region22: #{tpu_custom_call.1} parent=11 // pred_check_branch
          %283 = sbr.rel (%p281) target = $region24
        $region23: #{tpu_custom_call.1} parent=11 // pred_region
          _
        $region24: #{tpu_custom_call.1} parent=11 // pred_fallthru
          _
        // Predicated region
        $region25: #{tpu_custom_call.1} parent=11 // pred_check
          %p284 = pneg %p129
        $region26: #{tpu_custom_call.1} parent=11 // pred_check_branch
          %286 = sbr.rel (%p284) target = $region28
        $region27: #{tpu_custom_call.1} parent=11 // pred_region
          _
        $region28: #{tpu_custom_call.1} parent=11 // pred_fallthru
          _
        // Predicated region
        $region29: #{tpu_custom_call.1} parent=11 // pred_check
          %p287 = pneg %p150
        $region30: #{tpu_custom_call.1} parent=11 // pred_check_branch
          %289 = sbr.rel (%p287) target = $region32
        $region31: #{tpu_custom_call.1} parent=11 // pred_region
          _
        $region32: #{tpu_custom_call.1} parent=11 // pred_fallthru
          _
        // Predicated region
        $region33: #{tpu_custom_call.1} parent=11 // pred_check
          %p290 = pneg %p171
        $region34: #{tpu_custom_call.1} parent=11 // pred_check_branch
          %292 = sbr.rel (%p290) target = $region36
        $region35: #{tpu_custom_call.1} parent=11 // pred_region
          _
        $region36: #{tpu_custom_call.1} parent=11 // pred_fallthru
          _
        // Predicated region
        $region37: #{tpu_custom_call.1} parent=11 // pred_check
          %p293 = pneg %p192
        $region38: #{tpu_custom_call.1} parent=11 // pred_check_branch
          %295 = sbr.rel (%p293) target = $region40
        $region39: #{tpu_custom_call.1} parent=11 // pred_region
          _
        $region40: #{tpu_custom_call.1} parent=11 // pred_fallthru
          _
        // Predicated region
        $region41: #{tpu_custom_call.1} parent=11 // pred_check
          %p296 = pneg %p213
        $region42: #{tpu_custom_call.1} parent=11 // pred_check_branch
          %298 = sbr.rel (%p296) target = $region44
        $region43: #{tpu_custom_call.1} parent=11 // pred_region
          _
        $region44: #{tpu_custom_call.1} parent=11 // pred_fallthru
          _
        // Predicated region
        $region45: #{tpu_custom_call.1} parent=11 // pred_check
          %p299 = pneg %p234
        $region46: #{tpu_custom_call.1} parent=11 // pred_check_branch
          %301 = sbr.rel (%p299) target = $region48
        $region47: #{tpu_custom_call.1} parent=11 // pred_region
          _
        $region48: #{tpu_custom_call.1} parent=11 // pred_fallthru
          _
      $region12: #{tpu_custom_call.1} parent=5 // pred_fallthru
        _
      %p302 = scmp.lt.s32.totalorder %s19, 2
      // Predicated region
      $region49: #{tpu_custom_call.1} parent=5 // pred_check
        %p303 = pneg %p302
      $region50: #{tpu_custom_call.1} parent=5 // pred_check_branch
        %305 = sbr.rel (%p303) target = $region52
      $region51: #{tpu_custom_call.1} parent=5 // pred_region
        // Predicated region
        $region53: #{tpu_custom_call.1} parent=51 // pred_check
          %p306 = pneg %p39
        $region54: #{tpu_custom_call.1} parent=51 // pred_check_branch
          %308 = sbr.rel (%p306) target = $region56
        $region55: #{tpu_custom_call.1} parent=51 // pred_region
          %p309 = scmp.lt.s32.totalorder %s19, 1
          %s310 = scalar_select %p309, %s19, 1
          %s311 = smul.addr %s310, 2
          %s312 = smul.addr %s311, 4
          %s313 = scalar_lea.vmem %s0, %s312
        $region56: #{tpu_custom_call.1} parent=51 // pred_fallthru
          _
      $region52: #{tpu_custom_call.1} parent=5 // pred_fallthru
        _
      %p314 = scmp.le.s32.totalorder 1, %s19
      %p315 = scmp.lt.s32.totalorder %s19, 3
      %p316 = pnand %p314, %p315
      %p317 = pneg %p316
      // Predicated region
      $region57: #{tpu_custom_call.1} parent=5 // pred_check
        _
      $region58: #{tpu_custom_call.1} parent=5 // pred_check_branch
        %319 = sbr.rel (%p316) target = $region60
      $region59: #{tpu_custom_call.1} parent=5 // pred_region
        %s320 = ssub.s32 %s19, 1
        %p321 = scmp.lt.s32.totalorder %s24, 1
        %s322 = scalar_select %p321, %s24, 1
        %s323 = smul.addr %s322, 2
        %s324 = smul.addr %s323, 4
        %s325 = scalar_lea.vmem %s0, %s324
        %p326 = pneg %p45
        %p327 = pneg %p42
        %p328 = pneg %p66
        %p329 = pneg %p63
        %p330 = pneg %p87
        %p331 = pneg %p84
        %p332 = pneg %p108
        %p333 = pneg %p105
        %p334 = pneg %p129
        %p335 = pneg %p126
        %p336 = pneg %p150
        %p337 = pneg %p147
        %p338 = pneg %p171
        %p339 = pneg %p168
        %p340 = pneg %p192
        %p341 = pneg %p189
        %p342 = pneg %p213
        %p343 = pneg %p210
        %p344 = pneg %p234
        %p345 = pneg %p231
        %p346 = pneg %p260
        %p347 = pneg %p257
        %s348 = sand.u32 %s247, 1
        %s349 = scalar_lea.sflag [#allocation3], %s348
        %s350 = sand.u32 %s247, 1
        %s351 = smul.addr %s350, 8
        %s352 = scalar_lea.vmem [#allocation2], %s351
        %p353 = scmp.lt.s32.totalorder %s24, 1
        %s354 = scalar_select %p353, %s24, 1
        %s355 = smul.addr %s354, 2
        %s356 = smul.addr %s355, 4
        %s357 = scalar_lea.vmem %s0, %s356
        %v358 = vld [vmem:[%s1] sm:$0xff]
        %v359 = vld [vmem:[%s1 + $0x8] sm:$0xff]
        %v360 = vld [vmem:[%s1 + $0x10] sm:$0xff]
        %v361 = vld [vmem:[%s1 + $0x18] sm:$0xff]
        %v362 = vld [vmem:[%s1 + $0x20] sm:$0xff]
        %v363 = vld [vmem:[%s1 + $0x28] sm:$0xff]
        %v364 = vld [vmem:[%s1 + $0x30] sm:$0xff]
        %v365 = vld [vmem:[%s1 + $0x38] sm:$0xff]
        %v366 = vld [vmem:[%s1 + $0x40] sm:$0xff]
        %v367 = vld [vmem:[%s1 + $0x48] sm:$0xff]
        %v368 = vld [vmem:[%s1 + $0x50] sm:$0xff]
        %v369 = vld [vmem:[%s1 + $0x58] sm:$0xff]
        %v370 = vld [vmem:[%s1 + $0x60] sm:$0xff]
        %v371 = vld [vmem:[%s1 + $0x68] sm:$0xff]
        %v372 = vld [vmem:[%s1 + $0x70] sm:$0xff]
        %v373 = vld [vmem:[%s1 + $0x78] sm:$0xff]
        %v374 = vld [vmem:[%s1 + $0x80] sm:$0xff]
        %v375 = vld [vmem:[%s1 + $0x88] sm:$0xff]
        %v376 = vld [vmem:[%s1 + $0x90] sm:$0xff]
        %v377 = vld [vmem:[%s1 + $0x98] sm:$0xff]
        %v378 = vld [vmem:[%s1 + $0xa0] sm:$0xff]
        %v379 = vld [vmem:[%s1 + $0xa8] sm:$0xff]
        %v380 = vld [vmem:[%s1 + $0xb0] sm:$0xff]
        %v381 = vld [vmem:[%s1 + $0xb8] sm:$0xff]
        %v382 = vld [vmem:[%s1 + $0xc0] sm:$0xff]
        %v383 = vld [vmem:[%s1 + $0xc8] sm:$0xff]
        %v384 = vld [vmem:[%s1 + $0xd0] sm:$0xff]
        %v385 = vld [vmem:[%s1 + $0xd8] sm:$0xff]
        %v386 = vld [vmem:[%s1 + $0xe0] sm:$0xff]
        %v387 = vld [vmem:[%s1 + $0xe8] sm:$0xff]
        %v388 = vld [vmem:[%s1 + $0xf0] sm:$0xff]
        %v389 = vld [vmem:[%s1 + $0xf8] sm:$0xff]
        %v390 = vld [vmem:[%s2] sm:$0xff]
        %v391 = vld [vmem:[%s3] sm:$0xff]
        %v392 = vld [vmem:[%s4] sm:$0xf]
        %v393 = vld [vmem:[%s5] sm:$0xf]
        %v394 = vld [vmem:[%s6] sm:$0xf]
        %v395 = vld [vmem:[%s7] sm:$0xf]
        %v396 = vld [vmem:[%s8] sm:$0xff]
        %v397 = vld [vmem:[%s8 + $0x8] sm:$0xff]
        %v398 = vld [vmem:[%s8 + $0x10] sm:$0xff]
        %v399 = vld [vmem:[%s8 + $0x18] sm:$0xff]
        %v400 = vld [vmem:[%s8 + $0x20] sm:$0xff]
        %v401 = vld [vmem:[%s8 + $0x28] sm:$0xff]
        %v402 = vld [vmem:[%s8 + $0x30] sm:$0xff]
        %v403 = vld [vmem:[%s8 + $0x38] sm:$0xff]
        %v404 = vld [vmem:[%s9] sm:$0xff]
        %v405 = vld [vmem:[%s9 + $0x8] sm:$0xff]
        %v406 = vld [vmem:[%s9 + $0x10] sm:$0xff]
        %v407 = vld [vmem:[%s9 + $0x18] sm:$0xff]
        %v408 = vld [vmem:[%s9 + $0x20] sm:$0xff]
        %v409 = vld [vmem:[%s9 + $0x28] sm:$0xff]
        %v410 = vld [vmem:[%s9 + $0x30] sm:$0xff]
        %v411 = vld [vmem:[%s9 + $0x38] sm:$0xff]
        %v412 = vld [vmem:[%s357] sm:$0xff]
        %414 = vst [vmem:[#allocation1] ss:$2 sm:$0xff] %v412
        %v415 = vld.sshfl [vmem:[#allocation1] sm:$0xff pattern:$0x75316420]
        %v416 = vld.sshfl [vmem:[#allocation1 + $0x8] sm:$0xff pattern:$0x75316420]
        %419 = vmatpush.msra.mxu0 %v373
        %420 = vmatpush.msra.mxu0 %v372
        %421 = vmatpush.msra.mxu0 %v371
        %422 = vmatpush.msra.mxu0 %v370
        %423 = vmatpush.msra.mxu0 %v369
        %424 = vmatpush.msra.mxu0 %v368
        %425 = vmatpush.msra.mxu0 %v367
        %426 = vmatpush.msra.mxu0 %v366
        %427 = vmatpush.msra.mxu0 %v365
        %428 = vmatpush.msra.mxu0 %v364
        %429 = vmatpush.msra.mxu0 %v363
        %430 = vmatpush.msra.mxu0 %v362
        %431 = vmatpush.msra.mxu0 %v361
        %432 = vmatpush.msra.mxu0 %v360
        %433 = vmatpush.msra.mxu0 %v359
        %434 = vmatpush.msra.mxu0 %v358
        %435 = vmatmul.f32.gmra.mxu0 %v415
        %v436 = vpop.f32.mrf.mxu0
        %v437 = vadd.f32 0.0, %v436
        %438 = vdwg.mxu0
        %439 = vmatpush.msra.mxu0 %v389
        %440 = vmatpush.msra.mxu0 %v388
        %441 = vmatpush.msra.mxu0 %v387
        %442 = vmatpush.msra.mxu0 %v386
        %443 = vmatpush.msra.mxu0 %v385
        %444 = vmatpush.msra.mxu0 %v384
        %445 = vmatpush.msra.mxu0 %v383
        %446 = vmatpush.msra.mxu0 %v382
        %447 = vmatpush.msra.mxu0 %v381
        %448 = vmatpush.msra.mxu0 %v380
        %449 = vmatpush.msra.mxu0 %v379
        %450 = vmatpush.msra.mxu0 %v378
        %451 = vmatpush.msra.mxu0 %v377
        %452 = vmatpush.msra.mxu0 %v376
        %453 = vmatpush.msra.mxu0 %v375
        %454 = vmatpush.msra.mxu0 %v374
        %455 = vmatmul.f32.gmra.mxu0 %v416
        %v456 = vpop.f32.mrf.mxu0
        %v457 = vadd.f32 %v437, %v456
        %458 = vdwg.mxu0
        %460 = vset.pattern.permute.xlu0 0
        %461 = vperm.xlu0 %460, %v391
        %v462 = vpop.permute.xlu0 %461
        %vm464 = vcmask 31744
        %v466 = vsel %vm464, %v390, 0
        %vm468 = vcmask 1043456
        %v470 = vsel %vm468, %v457, 0
        %472 = vmatpush.msra.mxu0 0.0
        %473 = vmatpush.msra.mxu0 0.0
        %474 = vmatpush.msra.mxu0 0.0
        %475 = vmatpush.msra.mxu0 0.0
        %476 = vmatpush.msra.mxu0 0.0
        %477 = vmatpush.msra.mxu0 0.0
        %478 = vmatpush.msra.mxu0 0.0
        %479 = vmatpush.msra.mxu0 0.0
        %480 = vmatpush.msra.mxu0 0.0
        %481 = vmatpush.msra.mxu0 0.0
        %482 = vmatpush.msra.mxu0 0.0
        %483 = vmatpush.msra.mxu0 0.0
        %484 = vmatpush.msra.mxu0 0.0
        %485 = vmatpush.msra.mxu0 0.0
        %486 = vmatpush.msra.mxu0 0.0
        %487 = vmatpush.msra.mxu0 %v470
        %488 = vmatmul.f32.gmra.mxu0 %v466
        %v489 = vpop.f32.mrf.mxu0
        %v490 = vadd.f32 %v462, %v489
        %491 = vdwg.mxu0
        %v492 = vadd.f32 %v490, 3.0
        %v493 = vmax.f32 %v492, 0.0
        %v494 = vmin.f32 %v493, 6.0
        %v495 = vmul.f32 %v490, %v494
        %v496 = vmul.f32 %v495, 0.16666667
        %498 = vset.pattern.permute.xlu0 0
        %499 = vperm.xlu0 %498, %v393
        %v500 = vpop.permute.xlu0 %499
        %vm502 = vcmask 64512
        %v504 = vsel %vm502, %v392, 0
        %506 = vmatpush.msra.mxu0 0.0
        %507 = vmatpush.msra.mxu0 0.0
        %508 = vmatpush.msra.mxu0 0.0
        %509 = vmatpush.msra.mxu0 0.0
        %510 = vmatpush.msra.mxu0 0.0
        %511 = vmatpush.msra.mxu0 0.0
        %512 = vmatpush.msra.mxu0 0.0
        %513 = vmatpush.msra.mxu0 0.0
        %514 = vmatpush.msra.mxu0 0.0
        %515 = vmatpush.msra.mxu0 0.0
        %516 = vmatpush.msra.mxu0 0.0
        %517 = vmatpush.msra.mxu0 0.0
        %518 = vmatpush.msra.mxu0 0.0
        %519 = vmatpush.msra.mxu0 0.0
        %520 = vmatpush.msra.mxu0 0.0
        %521 = vmatpush.msra.mxu0 %v496
        %522 = vmatmul.f32.gmra.mxu0 %v504
        %v523 = vpop.f32.mrf.mxu0
        %v524 = vadd.f32 %v500, %v523
        %525 = vdwg.mxu0
        %v526 = vxor.u32 %v524, 2147483648
        %v527 = vmul.f32 %v526, 1.442695
        %v528 = vpow.pop %v527
        %v529 = vadd.f32 %v528, 1.0
        %v530 = vrcp.pop %v529
        %v531 = vmul.f32 %v529, %v530
        %v532 = vsub.f32 1.0, %v531
        %v533 = vmul.f32 %v530, %v532
        %v534 = vadd.f32 %v530, %v533
        %vm535 = vweird.f32 %v529
        %vm536 = vweird.f32 %v530
        %vm537 = vmor %vm535, %vm536
        %v538 = vsel %vm537, %v530, %v534
        %v539 = vand.u32 2147483647, %v529
        %vm540 = vcmp.eq.f32.partialorder %v539, 8.507059e+37
        %v541 = vand.u32 %v529, 2147483648
        %v542 = vor.u32 1.1754944e-38, %v541
        %v543 = vsel %vm540, %v542, %v538
        %v544 = vmul.f32 1.0, %v543
        %546 = vset.pattern.permute.xlu0 0
        %547 = vperm.xlu0 %546, %v395
        %v548 = vpop.permute.xlu0 %547
        %v551 = vsel %vm502, %v394, 0
        %553 = vmatpush.msra.mxu0 0.0
        %554 = vmatpush.msra.mxu0 0.0
        %555 = vmatpush.msra.mxu0 0.0
        %556 = vmatpush.msra.mxu0 0.0
        %557 = vmatpush.msra.mxu0 0.0
        %558 = vmatpush.msra.mxu0 0.0
        %559 = vmatpush.msra.mxu0 0.0
        %560 = vmatpush.msra.mxu0 0.0
        %561 = vmatpush.msra.mxu0 0.0
        %562 = vmatpush.msra.mxu0 0.0
        %563 = vmatpush.msra.mxu0 0.0
        %564 = vmatpush.msra.mxu0 0.0
        %565 = vmatpush.msra.mxu0 0.0
        %566 = vmatpush.msra.mxu0 0.0
        %567 = vmatpush.msra.mxu0 0.0
        %568 = vmatpush.msra.mxu0 %v496
        %569 = vmatmul.f32.gmra.mxu0 %v551
        %v570 = vpop.f32.mrf.mxu0
        %v571 = vadd.f32 %v548, %v570
        %572 = vdwg.mxu0
        %v573 = vxor.u32 %v571, 2147483648
        %v574 = vmul.f32 %v573, 1.442695
        %v575 = vpow.pop %v574
        %v576 = vadd.f32 %v575, 1.0
        %v577 = vrcp.pop %v576
        %v578 = vmul.f32 %v576, %v577
        %v579 = vsub.f32 1.0, %v578
        %v580 = vmul.f32 %v577, %v579
        %v581 = vadd.f32 %v577, %v580
        %vm582 = vweird.f32 %v576
        %vm583 = vweird.f32 %v577
        %vm584 = vmor %vm582, %vm583
        %v585 = vsel %vm584, %v577, %v581
        %v586 = vand.u32 2147483647, %v576
        %vm587 = vcmp.eq.f32.partialorder %v586, 8.507059e+37
        %v588 = vand.u32 %v576, 2147483648
        %v589 = vor.u32 1.1754944e-38, %v588
        %v590 = vsel %vm587, %v589, %v585
        %v591 = vmul.f32 1.0, %v590
        %vm592 = vcmask 261120
        %v594 = vsel %vm592, %v544, 0
        %596 = vmatpush.msra.mxu0 0.0
        %597 = vmatpush.msra.mxu0 0.0
        %598 = vmatpush.msra.mxu0 0.0
        %599 = vmatpush.msra.mxu0 0.0
        %600 = vmatpush.msra.mxu0 0.0
        %601 = vmatpush.msra.mxu0 0.0
        %602 = vmatpush.msra.mxu0 0.0
        %603 = vmatpush.msra.mxu0 0.0
        %604 = vmatpush.msra.mxu0 0.0
        %605 = vmatpush.msra.mxu0 0.0
        %606 = vmatpush.msra.mxu0 0.0
        %607 = vmatpush.msra.mxu0 0.0
        %608 = vmatpush.msra.mxu0 %v402
        %609 = vmatpush.msra.mxu0 %v400
        %610 = vmatpush.msra.mxu0 %v398
        %611 = vmatpush.msra.mxu0 %v396
        %612 = vmatmul.f32.gmra.mxu0 %v594
        %v613 = vpop.f32.mrf.mxu0
        %v614 = vadd.f32 0.0, %v613
        %615 = vdwg.mxu0
        %616 = vmatpush.msra.mxu0 0.0
        %617 = vmatpush.msra.mxu0 0.0
        %618 = vmatpush.msra.mxu0 0.0
        %619 = vmatpush.msra.mxu0 0.0
        %620 = vmatpush.msra.mxu0 0.0
        %621 = vmatpush.msra.mxu0 0.0
        %622 = vmatpush.msra.mxu0 0.0
        %623 = vmatpush.msra.mxu0 0.0
        %624 = vmatpush.msra.mxu0 0.0
        %625 = vmatpush.msra.mxu0 0.0
        %626 = vmatpush.msra.mxu0 0.0
        %627 = vmatpush.msra.mxu0 0.0
        %628 = vmatpush.msra.mxu0 %v403
        %629 = vmatpush.msra.mxu0 %v401
        %630 = vmatpush.msra.mxu0 %v399
        %631 = vmatpush.msra.mxu0 %v397
        %632 = vmatmul.f32.gmra.mxu0 %v594
        %v633 = vpop.f32.mrf.mxu0
        %v634 = vadd.f32 0.0, %v633
        %635 = vdwg.mxu0
        %v637 = vsel %vm592, %v591, 0
        %639 = vmatpush.msra.mxu0 0.0
        %640 = vmatpush.msra.mxu0 0.0
        %641 = vmatpush.msra.mxu0 0.0
        %642 = vmatpush.msra.mxu0 0.0
        %643 = vmatpush.msra.mxu0 0.0
        %644 = vmatpush.msra.mxu0 0.0
        %645 = vmatpush.msra.mxu0 0.0
        %646 = vmatpush.msra.mxu0 0.0
        %647 = vmatpush.msra.mxu0 0.0
        %648 = vmatpush.msra.mxu0 0.0
        %649 = vmatpush.msra.mxu0 0.0
        %650 = vmatpush.msra.mxu0 0.0
        %651 = vmatpush.msra.mxu0 %v410
        %652 = vmatpush.msra.mxu0 %v408
        %653 = vmatpush.msra.mxu0 %v406
        %654 = vmatpush.msra.mxu0 %v404
        %655 = vmatmul.f32.gmra.mxu0 %v637
        %v656 = vpop.f32.mrf.mxu0
        %v657 = vadd.f32 0.0, %v656
        %658 = vdwg.mxu0
        %659 = vmatpush.msra.mxu0 0.0
        %660 = vmatpush.msra.mxu0 0.0
        %661 = vmatpush.msra.mxu0 0.0
        %662 = vmatpush.msra.mxu0 0.0
        %663 = vmatpush.msra.mxu0 0.0
        %664 = vmatpush.msra.mxu0 0.0
        %665 = vmatpush.msra.mxu0 0.0
        %666 = vmatpush.msra.mxu0 0.0
        %667 = vmatpush.msra.mxu0 0.0
        %668 = vmatpush.msra.mxu0 0.0
        %669 = vmatpush.msra.mxu0 0.0
        %670 = vmatpush.msra.mxu0 0.0
        %671 = vmatpush.msra.mxu0 %v411
        %672 = vmatpush.msra.mxu0 %v409
        %673 = vmatpush.msra.mxu0 %v407
        %674 = vmatpush.msra.mxu0 %v405
        %675 = vmatmul.f32.gmra.mxu0 %v637
        %v676 = vpop.f32.mrf.mxu0
        %v677 = vadd.f32 0.0, %v676
        %678 = vdwg.mxu0
        %v681 = vrot.slane %v634, 4
        %v682 = vsel %vm468, %v614, %v681
        %v684 = vmul.f32 %v412, %v682
        %v687 = vrot.slane %v677, 4
        %v688 = vsel %vm468, %v657, %v687
        %v690 = vmul.f32 %v684, %v688
        %691 = vst [vmem:[%s352] sm:$0xff] %v690
        %s692 = sand.u32 %s247, 1
        %s693 = scalar_lea.sflag [#allocation3], %s692
        %s694 = sand.u32 %s247, 1
        %s695 = smul.addr %s694, 8
        %s696 = scalar_lea.vmem [#allocation2], %s695
        // Predicated region
        $region61: #{tpu_custom_call.1} parent=59 // pred_check
          %p697 = pneg %p257
        $region62: #{tpu_custom_call.1} parent=59 // pred_check_branch
          %699 = sbr.rel (%p697) target = $region64
        $region63: #{tpu_custom_call.1} parent=59 // pred_region
          %701 = vsyncadd %s693, 0
          %s702 = smul.addr %s24, 2
          %s703 = smul.addr %s702, 4
          %s704 = scalar_lea.hbm %s10, %s703
          %s706 = sshll.u32 %s696, 4
          %s707 = int_to_ptr.vmem [resolvable:$true] %s706
          %s708 = sshll.u32 %s704, 4
          %s709 = int_to_ptr.hbm [resolvable:$true] %s708
          %711 = dma.vmem_to_hbm [thread:$0]  %s707, 128, %s709, %s693
        $region64: #{tpu_custom_call.1} parent=59 // pred_fallthru
          _
      $region60: #{tpu_custom_call.1} parent=5 // pred_fallthru
        _
      %p712 = scmp.le.s32.totalorder 2, %s19
      // Predicated region
      $region65: #{tpu_custom_call.1} parent=5 // pred_check
        %p713 = pneg %p712
      $region66: #{tpu_custom_call.1} parent=5 // pred_check_branch
        %715 = sbr.rel (%p713) target = $region68
      $region67: #{tpu_custom_call.1} parent=5 // pred_region
        %s716 = ssub.s32 %s19, 2
        // Predicated region
        $region69: #{tpu_custom_call.1} parent=67 // pred_check
          %p717 = pneg %p263
        $region70: #{tpu_custom_call.1} parent=67 // pred_check_branch
          %719 = sbr.rel (%p717) target = $region72
        $region71: #{tpu_custom_call.1} parent=67 // pred_region
          %s720 = sand.u32 %s248, 1
          %s721 = scalar_lea.sflag [#allocation3], %s720
          %s722 = sand.u32 %s248, 1
          %s723 = smul.addr %s722, 8
          %s724 = scalar_lea.vmem [#allocation2], %s723
          %726 = dma.done %s721, 128
        $region72: #{tpu_custom_call.1} parent=67 // pred_fallthru
          _
      $region68: #{tpu_custom_call.1} parent=5 // pred_fallthru
        _
    $region6: #{tpu_custom_call.1} parent=1 // loop_footer
      %s23 = sadd.s32 1, %s19
    $region7: #{tpu_custom_call.1} parent=1 // loop_footer_branch
      %18 = sbr.rel target = $region3
    $region8: #{tpu_custom_call.1} parent=1 // loop_exit
      _
    %727 = vsyncpa [#allocation3], 1
    %s728 = scalar_lea.sflag [#allocation3], 1
    %729 = vsyncpa %s728, 1

</llo_original>
